<compile_context>
chip_gen: v7x
topology: tpu7x:2x2x1
jax: 0.10.0
libtpu: 0.0.40
codegen_flags: <defaults>
</compile_context>

<pallas_src>
import jax
import jax.numpy as jnp
from jax.experimental import pallas as pl
from jax.experimental.pallas import tpu as pltpu


def _round_up(v, m):
    return ((v + m - 1) // m) * m


# ---------------------------------------------------------------------------
# Kernel
# ---------------------------------------------------------------------------
def _residual_block_kernel(x_ref, w1_ref, b1_ref, w2_ref, b2_ref, o_ref):
    x = x_ref[...]                                   # (tb, D_pad), f32
    x_c = x.astype(w1_ref.dtype)                     # bf16 copy for the MXU

    # fc1: bf16 x bf16 -> f32 accumulate, then bias + ReLU in f32.
    h = jnp.dot(x_c, w1_ref[...], preferred_element_type=jnp.float32)
    h = jnp.maximum(h + b1_ref[...], 0.0)

    # Dropout (inference mode) -> identity.

    # fc2: cast activation to bf16 for the MXU, f32 accumulate.
    y = jnp.dot(h.astype(w2_ref.dtype), w2_ref[...],
                preferred_element_type=jnp.float32)
    y = y + b2_ref[...] + x.astype(jnp.float32)      # bias + residual (f32)

    o_ref[...] = jnp.maximum(y, 0.0).astype(o_ref.dtype)


# ---------------------------------------------------------------------------
# One-time parameter preparation (pad to lane-dense D, cast weights to bf16).
# Hoisted out of the per-call wrapper so repeated inference pays no pad cost.
# ---------------------------------------------------------------------------
def prepare_residual_block_params(w1, b1, w2, b2, *, compute_dtype=jnp.bfloat16):
    D = w1.shape[0]
    D_pad = _round_up(max(D, 128), 128)
    pad_w = ((0, D_pad - D), (0, D_pad - D))
    w1_p = jnp.pad(w1, pad_w).astype(compute_dtype)
    w2_p = jnp.pad(w2, pad_w).astype(compute_dtype)
    # Biases are added after the f32 accumulation -> keep them in f32.
    b1_p = jnp.pad(b1.reshape(1, D), ((0, 0), (0, D_pad - D))).astype(jnp.float32)
    b2_p = jnp.pad(b2.reshape(1, D), ((0, 0), (0, D_pad - D))).astype(jnp.float32)
    return {"w1": w1_p, "b1": b1_p, "w2": w2_p, "b2": b2_p,
            "dim": D, "dim_pad": D_pad}


def _choose_batch_tile(B, block_b):
    B_aligned = _round_up(B, 8)
    # >= 2 grid steps whenever the batch allows, so v7x's 2nd TC gets work.
    min_steps = 2 if B_aligned >= 16 else 1
    n_steps = max(min_steps, pl.cdiv(B_aligned, block_b))
    tb = _round_up(pl.cdiv(B_aligned, n_steps), 8)
    # MXU-height alignment (2x256 systolic on v6e/v7x) for big tiles.
    if tb > 256:
        tb = _round_up(tb, 256)
    B_pad = _round_up(B_aligned, tb)
    return tb, B_pad


def _vmem_limit_bytes(est_bytes):
    phys = 64 * 1024 * 1024            # conservative fallback (v7x)
    try:
        info = pltpu.get_tpu_info()
        phys = int(getattr(info, "vmem_capacity_bytes", phys) or phys)
    except Exception:
        pass
    # Headroom for compiler-internal scratch / semaphores / pipeline buffers:
    # ~56 MiB on v7x (64 MiB physical), ~112 MiB on v5e/v6e (128 MiB physical).
    ceiling = min(int(phys * 0.875), phys - 8 * 1024 * 1024)
    return int(min(max(est_bytes, 16 * 1024 * 1024), ceiling))


# ---------------------------------------------------------------------------
# Wrapper
# ---------------------------------------------------------------------------
def residual_block(x, params, *, block_b=256):
    """x: (B, D) f32; params: output of prepare_residual_block_params."""
    B, D = x.shape
    assert D == params["dim"], "feature dim mismatch with prepared params"
    D_pad = params["dim_pad"]
    w1_p, b1_p, w2_p, b2_p = params["w1"], params["b1"], params["w2"], params["b2"]

    tb, B_pad = _choose_batch_tile(B, block_b)

    # Only pad the activation when genuinely ragged (avoids extra HBM traffic).
    needs_pad = (B_pad != B) or (D_pad != D)
    x_p = jnp.pad(x, ((0, B_pad - B), (0, D_pad - D))) if needs_pad else x

    # VMEM budget: resident weights (double-buffered by the auto-pipeline),
    # x/out tiles, biases, and f32 intermediates.
    wt_isz = jnp.dtype(w1_p.dtype).itemsize
    x_isz = jnp.dtype(x.dtype).itemsize
    est = (2 * D_pad * D_pad * wt_isz * 2        # W1, W2 (x2 buffers)
           + 2 * tb * D_pad * x_isz * 2          # x, out tiles (x2 buffers)
           + 2 * D_pad * 4 * 2                   # biases (f32, x2 buffers)
           + 3 * tb * D_pad * 4)                 # f32 intermediates
    vmem_limit = _vmem_limit_bytes(est)

    out_p = pl.pallas_call(
        _residual_block_kernel,
        out_shape=jax.ShapeDtypeStruct((B_pad, D_pad), x.dtype),
        grid=(B_pad // tb,),
        in_specs=[
            pl.BlockSpec((tb, D_pad), lambda i: (i, 0)),      # x tile
            pl.BlockSpec((D_pad, D_pad), lambda i: (0, 0)),   # W1 (resident)
            pl.BlockSpec((1, D_pad), lambda i: (0, 0)),       # b1 (resident)
            pl.BlockSpec((D_pad, D_pad), lambda i: (0, 0)),   # W2 (resident)
            pl.BlockSpec((1, D_pad), lambda i: (0, 0)),       # b2 (resident)
        ],
        out_specs=pl.BlockSpec((tb, D_pad), lambda i: (i, 0)),
        compiler_params=pltpu.CompilerParams(
            dimension_semantics=("parallel",),
            vmem_limit_bytes=vmem_limit),
    )(x_p, w1_p, b1_p, w2_p, b2_p)

    return out_p[:B, :D] if needs_pad else out_p


# ---------------------------------------------------------------------------
# Reference (same bf16-on-MXU / f32-accumulate numerics as the kernel)
# ---------------------------------------------------------------------------
def residual_block_ref(x, w1, b1, w2, b2, compute_dtype=jnp.bfloat16):
    xc = x.astype(compute_dtype)
    h = jnp.dot(xc, w1.astype(compute_dtype),
                preferred_element_type=jnp.float32) + b1
    h = jnp.maximum(h, 0.0)
    y = jnp.dot(h.astype(compute_dtype), w2.astype(compute_dtype),
                preferred_element_type=jnp.float32) + b2 + x
    return jnp.maximum(y, 0.0)


if __name__ == "__main__":
    B, D = 8, 32                     # small shapes: batch=8, hidden dim=32
    key = jax.random.PRNGKey(0)
    kx, kw1, kb1, kw2, kb2 = jax.random.split(key, 5)

    # Deterministic "PyTorch-like" init: U(-1/sqrt(D), 1/sqrt(D))
    bound = 1.0 / (D ** 0.5)
    x  = jax.random.normal(kx, (B, D), dtype=jnp.float32)
    w1 = jax.random.uniform(kw1, (D, D), minval=-bound, maxval=bound,
                            dtype=jnp.float32)   # stored as (in, out)
    b1 = jax.random.uniform(kb1, (D,),   minval=-bound, maxval=bound,
                            dtype=jnp.float32)
    w2 = jax.random.uniform(kw2, (D, D), minval=-bound, maxval=bound,
                            dtype=jnp.float32)   # stored as (in, out)
    b2 = jax.random.uniform(kb2, (D,),   minval=-bound, maxval=bound,
                            dtype=jnp.float32)

    # Pad + cast the parameters once (hoisted out of the hot path).
    params = prepare_residual_block_params(w1, b1, w2, b2)

    fwd = jax.jit(lambda xx: residual_block(xx, params))
    out = jax.block_until_ready(fwd(x))

    ref = residual_block_ref(x, w1, b1, w2, b2)
    assert out.shape == (B, D)
    # bf16-on-MXU with f32 accumulation is the intended numerics; the reference
    # uses the same rounding, so only accumulation-order noise remains.
    assert jnp.allclose(out, ref, atol=1e-3, rtol=1e-3), "mismatch vs JAX reference"

    print("KERNEL_OK")
</pallas_src>

<mosaic_0001>
module attributes {stable_mosaic.version = 11 : i64} {
  func.func @_residual_block_kernel(%arg0: i32, %arg1: memref<8x128xf32, #tpu.memory_space<vmem>>, %arg2: memref<128x128xbf16, #tpu.memory_space<vmem>>, %arg3: memref<1x128xf32, #tpu.memory_space<vmem>>, %arg4: memref<128x128xbf16, #tpu.memory_space<vmem>>, %arg5: memref<1x128xf32, #tpu.memory_space<vmem>>, %arg6: memref<8x128xf32, #tpu.memory_space<vmem>>) attributes {dimension_semantics = [#tpu.dimension_semantics<parallel>], iteration_bounds = array<i64: 1>, scalar_prefetch = 0 : i64, scratch_operands = 0 : i64, tpu.core_type = #tpu.core_type<tc>, window_params = [{transform_indices = @transform_0, window_bounds = array<i64: 8, 128>}, {pipeline_mode = #tpu.pipeline_mode<synchronous>, transform_indices = @transform_1, window_bounds = array<i64: 128, 128>}, {pipeline_mode = #tpu.pipeline_mode<synchronous>, transform_indices = @transform_2, window_bounds = array<i64: 1, 128>}, {pipeline_mode = #tpu.pipeline_mode<synchronous>, transform_indices = @transform_3, window_bounds = array<i64: 128, 128>}, {pipeline_mode = #tpu.pipeline_mode<synchronous>, transform_indices = @transform_4, window_bounds = array<i64: 1, 128>}, {transform_indices = @transform_5, window_bounds = array<i64: 8, 128>}]} {
    %c0 = arith.constant 0 : index
    %c0_0 = arith.constant 0 : index
    %0 = vector.load %arg1[%c0, %c0_0] : memref<8x128xf32, #tpu.memory_space<vmem>>, vector<8x128xf32>
    %1 = arith.truncf %0 : vector<8x128xf32> to vector<8x128xbf16>
    %c0_1 = arith.constant 0 : index
    %c0_2 = arith.constant 0 : index
    %2 = vector.load %arg2[%c0_1, %c0_2] : memref<128x128xbf16, #tpu.memory_space<vmem>>, vector<128x128xbf16>
    %cst = arith.constant dense<0.000000e+00> : vector<8x128xf32>
    %3 = tpu.matmul %1, %2, %cst {dimension_numbers = #tpu.dot_dimension_numbers<[1], [0], [0], [1], [0, 0, 1, 1], [], []>} : vector<8x128xbf16>, vector<128x128xbf16>, vector<8x128xf32> -> vector<8x128xf32>
    %c0_3 = arith.constant 0 : index
    %c0_4 = arith.constant 0 : index
    %4 = vector.load %arg3[%c0_3, %c0_4] : memref<1x128xf32, #tpu.memory_space<vmem>>, vector<1x128xf32>
    %5 = vector.broadcast %4 : vector<1x128xf32> to vector<8x128xf32>
    %6 = arith.addf %3, %5 : vector<8x128xf32>
    %cst_5 = arith.constant 0.000000e+00 : f32
    %7 = vector.broadcast %cst_5 : f32 to vector<8x128xf32>
    %8 = arith.maximumf %6, %7 : vector<8x128xf32>
    %9 = arith.truncf %8 : vector<8x128xf32> to vector<8x128xbf16>
    %c0_6 = arith.constant 0 : index
    %c0_7 = arith.constant 0 : index
    %10 = vector.load %arg4[%c0_6, %c0_7] : memref<128x128xbf16, #tpu.memory_space<vmem>>, vector<128x128xbf16>
    %cst_8 = arith.constant dense<0.000000e+00> : vector<8x128xf32>
    %11 = tpu.matmul %9, %10, %cst_8 {dimension_numbers = #tpu.dot_dimension_numbers<[1], [0], [0], [1], [0, 0, 1, 1], [], []>} : vector<8x128xbf16>, vector<128x128xbf16>, vector<8x128xf32> -> vector<8x128xf32>
    %c0_9 = arith.constant 0 : index
    %c0_10 = arith.constant 0 : index
    %12 = vector.load %arg5[%c0_9, %c0_10] : memref<1x128xf32, #tpu.memory_space<vmem>>, vector<1x128xf32>
    %13 = vector.broadcast %12 : vector<1x128xf32> to vector<8x128xf32>
    %14 = arith.addf %11, %13 : vector<8x128xf32>
    %15 = arith.addf %14, %0 : vector<8x128xf32>
    %cst_11 = arith.constant 0.000000e+00 : f32
    %16 = vector.broadcast %cst_11 : f32 to vector<8x128xf32>
    %17 = arith.maximumf %15, %16 : vector<8x128xf32>
    %c0_12 = arith.constant 0 : index
    %c0_13 = arith.constant 0 : index
    %18 = vector.load %arg6[%c0_12, %c0_13] : memref<8x128xf32, #tpu.memory_space<vmem>>, vector<8x128xf32>
    tpu.vector_store %arg6[%c0_12, %c0_13], %17 {strides = array<i32>} : memref<8x128xf32, #tpu.memory_space<vmem>>, vector<8x128xf32>,
    return
  }
  func.func @transform_0(%arg0: i32) -> (i32, i32) {
    %c0_i32 = arith.constant 0 : i32
    %c0_i32_0 = arith.constant 0 : i32
    return %arg0, %c0_i32 : i32, i32
  }
  func.func @transform_1(%arg0: i32) -> (i32, i32) {
    %c0_i32 = arith.constant 0 : i32
    %c0_i32_0 = arith.constant 0 : i32
    %c0_i32_1 = arith.constant 0 : i32
    return %c0_i32, %c0_i32_0 : i32, i32
  }
  func.func @transform_2(%arg0: i32) -> (i32, i32) {
    %c0_i32 = arith.constant 0 : i32
    %c0_i32_0 = arith.constant 0 : i32
    %c0_i32_1 = arith.constant 0 : i32
    return %c0_i32, %c0_i32_0 : i32, i32
  }
  func.func @transform_3(%arg0: i32) -> (i32, i32) {
    %c0_i32 = arith.constant 0 : i32
    %c0_i32_0 = arith.constant 0 : i32
    %c0_i32_1 = arith.constant 0 : i32
    return %c0_i32, %c0_i32_0 : i32, i32
  }
  func.func @transform_4(%arg0: i32) -> (i32, i32) {
    %c0_i32 = arith.constant 0 : i32
    %c0_i32_0 = arith.constant 0 : i32
    %c0_i32_1 = arith.constant 0 : i32
    return %c0_i32, %c0_i32_0 : i32, i32
  }
  func.func @transform_5(%arg0: i32) -> (i32, i32) {
    %c0_i32 = arith.constant 0 : i32
    %c0_i32_0 = arith.constant 0 : i32
    return %arg0, %c0_i32 : i32, i32
  }
}

</mosaic_0001>

<llo_original>
// kernel: _lambda_.1
$region0: #{_lambda_.1}
  #allocation0 [shape = 'u32[]', space=smem, size = 0x4, offset = 0x4, fixed_abs, tag = 'smem constant byte address 0x4 - core index']
  #allocation1 [shape = 'u32[144,128]{1,0:T(1,128)}', space=vmem, size = 0x12000, scoped, tag = 'internal scratch']
  %s0 = inlined_call_operand.vmem [shape: f32[8,128], index: 0, kind: input, shape index: {}]
  %s1 = inlined_call_operand.hbm [shape: bf16[128,128], index: 1, kind: input, shape index: {}]
  %s2 = inlined_call_operand.vmem [shape: f32[1,128], index: 2, kind: input, shape index: {}]
  %s3 = inlined_call_operand.hbm [shape: bf16[128,128], index: 3, kind: input, shape index: {}]
  %s4 = inlined_call_operand.vmem [shape: f32[1,128], index: 4, kind: input, shape index: {}]
  %s5 = inlined_call_operand.hbm [shape: f32[8,128], index: 5, kind: output, shape index: {}]
  %s6 = sld [smem:[#allocation0]]
  $region38: #{_lambda_.1} parent=0
    _
  %s8 = ssub.s32 1, %s6
  %s9 = scalar_select 0, %s8, %s6
  $region1: #{_lambda_.1} parent=0
    #allocation2 [shape = 'u8[32768]{0}', space=vmem, size = 0x8000, scoped, tag = 'input window, operand 1, single buffered']
    #allocation3 [shape = 's32[1]{0}', space=sflag, size = 0x4, scoped, tag = 'scoped memory for _lambda_.1']
    #allocation4 [shape = 's32[1]{0}', space=sflag, size = 0x4, scoped, tag = 'scoped memory for _lambda_.1']
    #allocation5 [shape = 'u8[32768]{0}', space=vmem, size = 0x8000, scoped, tag = 'input window, operand 3, single buffered']
    #allocation6 [shape = 's32[1]{0}', space=sflag, size = 0x4, scoped, tag = 'scoped memory for _lambda_.1']
    #allocation7 [shape = 'u8[4096]{0}', space=vmem, size = 0x1000, scoped, tag = 'output window, operand 0, single buffered']
    %10 = vsyncpa [#allocation3], 0
    %11 = vsyncpa [#allocation6], 0
    %12 = vsyncpa [#allocation4], 0
    // Predicated region
    $region2: #{_lambda_.1} parent=1 // pred_check
      _
    $region3: #{_lambda_.1} parent=1 // pred_check_branch
      %14 = sbr.rel (0) target = $region5
    $region4: #{_lambda_.1} parent=1 // pred_region
      _
    $region5: #{_lambda_.1} parent=1 // pred_fallthru
      _
    // Predicated region
    $region6: #{_lambda_.1} parent=1 // pred_check
      _
    $region7: #{_lambda_.1} parent=1 // pred_check_branch
      %16 = sbr.rel (0) target = $region9
    $region8: #{_lambda_.1} parent=1 // pred_region
      %s18 = ssub.s32 1024, 1024
      %19 = vsyncadd [#allocation3], %s18
      %s20 = sshll.u32 [#allocation2], 4
      %s21 = int_to_ptr.vmem [resolvable:$true] %s20
      %26 = dma.hbm_to_vmem [thread:$0]  %s1, 1024, %s21, [#allocation3], 64, 64, 4
    $region9: #{_lambda_.1} parent=1 // pred_fallthru
      _
    // Predicated region
    $region10: #{_lambda_.1} parent=1 // pred_check
      _
    $region11: #{_lambda_.1} parent=1 // pred_check_branch
      %28 = sbr.rel (0) target = $region13
    $region12: #{_lambda_.1} parent=1 // pred_region
      _
    $region13: #{_lambda_.1} parent=1 // pred_fallthru
      _
    // Predicated region
    $region14: #{_lambda_.1} parent=1 // pred_check
      _
    $region15: #{_lambda_.1} parent=1 // pred_check_branch
      %30 = sbr.rel (0) target = $region17
    $region16: #{_lambda_.1} parent=1 // pred_region
      %s32 = ssub.s32 1024, 1024
      %33 = vsyncadd [#allocation6], %s32
      %s34 = sshll.u32 [#allocation5], 4
      %s35 = int_to_ptr.vmem [resolvable:$true] %s34
      %40 = dma.hbm_to_vmem [thread:$0]  %s3, 1024, %s35, [#allocation6], 64, 64, 4
    $region17: #{_lambda_.1} parent=1 // pred_fallthru
      _
    // Predicated region
    $region18: #{_lambda_.1} parent=1 // pred_check
      _
    $region19: #{_lambda_.1} parent=1 // pred_check_branch
      %42 = sbr.rel (0) target = $region21
    $region20: #{_lambda_.1} parent=1 // pred_region
      _
    $region21: #{_lambda_.1} parent=1 // pred_fallthru
      _
    // Predicated region
    $region22: #{_lambda_.1} parent=1 // pred_check
      _
    $region23: #{_lambda_.1} parent=1 // pred_check_branch
      %44 = sbr.rel (0) target = $region25
    $region24: #{_lambda_.1} parent=1 // pred_region
      %45 = dma.done [#allocation3], 1024
    $region25: #{_lambda_.1} parent=1 // pred_fallthru
      _
    // Predicated region
    $region26: #{_lambda_.1} parent=1 // pred_check
      _
    $region27: #{_lambda_.1} parent=1 // pred_check_branch
      %47 = sbr.rel (0) target = $region29
    $region28: #{_lambda_.1} parent=1 // pred_region
      %48 = dma.done [#allocation6], 1024
    $region29: #{_lambda_.1} parent=1 // pred_fallthru
      _
    %v50 = vld [vmem:[%s0] sm:$0xff]
    %v51 = vpack.c.bf16 %v50, %v50
    %v52 = vld [vmem:[#allocation2] sm:$0xf]
    %v53 = vld [vmem:[#allocation2 + $0x4] sm:$0xf]
    %v54 = vld [vmem:[#allocation2 + $0x8] sm:$0xf]
    %v55 = vld [vmem:[#allocation2 + $0xc] sm:$0xf]
    %v56 = vld [vmem:[#allocation2 + $0x10] sm:$0xf]
    %v57 = vld [vmem:[#allocation2 + $0x14] sm:$0xf]
    %v58 = vld [vmem:[#allocation2 + $0x18] sm:$0xf]
    %v59 = vld [vmem:[#allocation2 + $0x1c] sm:$0xf]
    %v60 = vld [vmem:[#allocation2 + $0x20] sm:$0xf]
    %v61 = vld [vmem:[#allocation2 + $0x24] sm:$0xf]
    %v62 = vld [vmem:[#allocation2 + $0x28] sm:$0xf]
    %v63 = vld [vmem:[#allocation2 + $0x2c] sm:$0xf]
    %v64 = vld [vmem:[#allocation2 + $0x30] sm:$0xf]
    %v65 = vld [vmem:[#allocation2 + $0x34] sm:$0xf]
    %v66 = vld [vmem:[#allocation2 + $0x38] sm:$0xf]
    %v67 = vld [vmem:[#allocation2 + $0x3c] sm:$0xf]
    %v68 = vld [vmem:[%s2] sm:$0x1]
    %v70 = vlaneseq
    %v71 = vshrl.u32 %v70, 7
    %v72 = vsub.s32 0, %v71
    %v73 = vrot.slane %v68, %v72
    %v91 = vunpack.c.l.b16 %v52
    %v92 = vunpack.c.l.b16 %v53
    %v93 = vunpack.c.l.b16 %v54
    %v94 = vunpack.c.l.b16 %v55
    %v95 = vunpack.c.l.b16 %v56
    %v96 = vunpack.c.l.b16 %v57
    %v97 = vunpack.c.l.b16 %v58
    %v98 = vunpack.c.l.b16 %v59
    %v99 = vunpack.c.l.b16 %v60
    %v100 = vunpack.c.l.b16 %v61
    %v101 = vunpack.c.l.b16 %v62
    %v102 = vunpack.c.l.b16 %v63
    %v103 = vunpack.c.l.b16 %v64
    %v104 = vunpack.c.l.b16 %v65
    %v105 = vunpack.c.l.b16 %v66
    %v106 = vunpack.c.l.b16 %v67
    %v107 = vpack.c.b16 %v92, %v91
    %v108 = vpack.c.b16 %v94, %v93
    %v109 = vpack.c.b16 %v96, %v95
    %v110 = vpack.c.b16 %v98, %v97
    %v111 = vpack.c.b16 %v100, %v99
    %v112 = vpack.c.b16 %v102, %v101
    %v113 = vpack.c.b16 %v104, %v103
    %v114 = vpack.c.b16 %v106, %v105
    %123 = vmatprep.subr.bf16.mxu0 0
    %124 = vmatpush1.bf16.msra.mxu0 %v107
    %125 = vmatprep.subr.bf16.mxu0 0
    %126 = vmatpush1.bf16.msra.mxu0 %v108
    %127 = vmatprep.subr.bf16.mxu0 0
    %128 = vmatpush1.bf16.msra.mxu0 %v109
    %129 = vmatprep.subr.bf16.mxu0 0
    %130 = vmatpush1.bf16.msra.mxu0 %v110
    %131 = vmatprep.subr.bf16.mxu0 0
    %132 = vmatpush1.bf16.msra.mxu0 %v111
    %133 = vmatprep.subr.bf16.mxu0 0
    %134 = vmatpush1.bf16.msra.mxu0 %v112
    %135 = vmatprep.subr.bf16.mxu0 0
    %136 = vmatpush1.bf16.msra.mxu0 %v113
    %137 = vmatprep.subr.bf16.mxu0 0
    %138 = vmatpush1.bf16.msra.mxu0 %v114
    %139 = vmatprep.subr.bf16.mxu0 0
    %140 = vmatpush1.bf16.msra.mxu0 0
    %141 = vmatprep.subr.bf16.mxu0 0
    %142 = vmatpush1.bf16.msra.mxu0 0
    %143 = vmatprep.subr.bf16.mxu0 0
    %144 = vmatpush1.bf16.msra.mxu0 0
    %145 = vmatprep.subr.bf16.mxu0 0
    %146 = vmatpush1.bf16.msra.mxu0 0
    %147 = vmatprep.subr.bf16.mxu0 0
    %148 = vmatpush1.bf16.msra.mxu0 0
    %149 = vmatprep.subr.bf16.mxu0 0
    %150 = vmatpush1.bf16.msra.mxu0 0
    %151 = vmatprep.subr.bf16.mxu0 0
    %152 = vmatpush1.bf16.msra.mxu0 0
    %153 = vmatprep.subr.bf16.mxu0 0
    %154 = vmatpush1.bf16.msra.mxu0 0
    %155 = vmatprep.mubr.bf16.mxu0 0
    %156 = vmatmul.mubr.bf16.gmra.mrb[0].mxu0 %v51
    %v157 = vpop.f32.mrb[0].mxu0
    %v158 = vadd.f32 %v73, %v157
    %v159 = vpop.f32.mrb[0].mxu0
    %v160 = vpop.f32.mrb[0].mxu0
    %v161 = vpop.f32.mrb[0].mxu0
    %162 = vdwg.mxu0
    %v163 = vmax.f32 %v158, 0.0
    %v164 = vpack.c.bf16 %v163, %v163
    %v165 = vld [vmem:[#allocation5] sm:$0xf]
    %v166 = vld [vmem:[#allocation5 + $0x4] sm:$0xf]
    %v167 = vld [vmem:[#allocation5 + $0x8] sm:$0xf]
    %v168 = vld [vmem:[#allocation5 + $0xc] sm:$0xf]
    %v169 = vld [vmem:[#allocation5 + $0x10] sm:$0xf]
    %v170 = vld [vmem:[#allocation5 + $0x14] sm:$0xf]
    %v171 = vld [vmem:[#allocation5 + $0x18] sm:$0xf]
    %v172 = vld [vmem:[#allocation5 + $0x1c] sm:$0xf]
    %v173 = vld [vmem:[#allocation5 + $0x20] sm:$0xf]
    %v174 = vld [vmem:[#allocation5 + $0x24] sm:$0xf]
    %v175 = vld [vmem:[#allocation5 + $0x28] sm:$0xf]
    %v176 = vld [vmem:[#allocation5 + $0x2c] sm:$0xf]
    %v177 = vld [vmem:[#allocation5 + $0x30] sm:$0xf]
    %v178 = vld [vmem:[#allocation5 + $0x34] sm:$0xf]
    %v179 = vld [vmem:[#allocation5 + $0x38] sm:$0xf]
    %v180 = vld [vmem:[#allocation5 + $0x3c] sm:$0xf]
    %v181 = vld [vmem:[%s4] sm:$0x1]
    %v183 = vlaneseq
    %v184 = vshrl.u32 %v183, 7
    %v185 = vsub.s32 0, %v184
    %v186 = vrot.slane %v181, %v185
    %v204 = vunpack.c.l.b16 %v165
    %v205 = vunpack.c.l.b16 %v166
    %v206 = vunpack.c.l.b16 %v167
    %v207 = vunpack.c.l.b16 %v168
    %v208 = vunpack.c.l.b16 %v169
    %v209 = vunpack.c.l.b16 %v170
    %v210 = vunpack.c.l.b16 %v171
    %v211 = vunpack.c.l.b16 %v172
    %v212 = vunpack.c.l.b16 %v173
    %v213 = vunpack.c.l.b16 %v174
    %v214 = vunpack.c.l.b16 %v175
    %v215 = vunpack.c.l.b16 %v176
    %v216 = vunpack.c.l.b16 %v177
    %v217 = vunpack.c.l.b16 %v178
    %v218 = vunpack.c.l.b16 %v179
    %v219 = vunpack.c.l.b16 %v180
    %v220 = vpack.c.b16 %v205, %v204
    %v221 = vpack.c.b16 %v207, %v206
    %v222 = vpack.c.b16 %v209, %v208
    %v223 = vpack.c.b16 %v211, %v210
    %v224 = vpack.c.b16 %v213, %v212
    %v225 = vpack.c.b16 %v215, %v214
    %v226 = vpack.c.b16 %v217, %v216
    %v227 = vpack.c.b16 %v219, %v218
    %236 = vmatprep.subr.bf16.mxu0 0
    %237 = vmatpush1.bf16.msra.mxu0 %v220
    %238 = vmatprep.subr.bf16.mxu0 0
    %239 = vmatpush1.bf16.msra.mxu0 %v221
    %240 = vmatprep.subr.bf16.mxu0 0
    %241 = vmatpush1.bf16.msra.mxu0 %v222
    %242 = vmatprep.subr.bf16.mxu0 0
    %243 = vmatpush1.bf16.msra.mxu0 %v223
    %244 = vmatprep.subr.bf16.mxu0 0
    %245 = vmatpush1.bf16.msra.mxu0 %v224
    %246 = vmatprep.subr.bf16.mxu0 0
    %247 = vmatpush1.bf16.msra.mxu0 %v225
    %248 = vmatprep.subr.bf16.mxu0 0
    %249 = vmatpush1.bf16.msra.mxu0 %v226
    %250 = vmatprep.subr.bf16.mxu0 0
    %251 = vmatpush1.bf16.msra.mxu0 %v227
    %252 = vmatprep.subr.bf16.mxu0 0
    %253 = vmatpush1.bf16.msra.mxu0 0
    %254 = vmatprep.subr.bf16.mxu0 0
    %255 = vmatpush1.bf16.msra.mxu0 0
    %256 = vmatprep.subr.bf16.mxu0 0
    %257 = vmatpush1.bf16.msra.mxu0 0
    %258 = vmatprep.subr.bf16.mxu0 0
    %259 = vmatpush1.bf16.msra.mxu0 0
    %260 = vmatprep.subr.bf16.mxu0 0
    %261 = vmatpush1.bf16.msra.mxu0 0
    %262 = vmatprep.subr.bf16.mxu0 0
    %263 = vmatpush1.bf16.msra.mxu0 0
    %264 = vmatprep.subr.bf16.mxu0 0
    %265 = vmatpush1.bf16.msra.mxu0 0
    %266 = vmatprep.subr.bf16.mxu0 0
    %267 = vmatpush1.bf16.msra.mxu0 0
    %268 = vmatprep.mubr.bf16.mxu0 0
    %269 = vmatmul.mubr.bf16.gmra.mrb[0].mxu0 %v164
    %v270 = vpop.f32.mrb[0].mxu0
    %v271 = vadd.f32 %v186, %v270
    %v272 = vpop.f32.mrb[0].mxu0
    %v273 = vpop.f32.mrb[0].mxu0
    %v274 = vpop.f32.mrb[0].mxu0
    %275 = vdwg.mxu0
    %v276 = vadd.f32 %v271, %v50
    %v277 = vmax.f32 %v276, 0.0
    %278 = vst [vmem:[#allocation7] sm:$0xff] %v277
    // Predicated region
    $region30: #{_lambda_.1} parent=1 // pred_check
      _
    $region31: #{_lambda_.1} parent=1 // pred_check_branch
      %280 = sbr.rel (0) target = $region33
    $region32: #{_lambda_.1} parent=1 // pred_region
      %s282 = ssub.s32 128, 128
      %283 = vsyncadd [#allocation4], %s282
      %s285 = sshll.u32 [#allocation7], 4
      %s286 = int_to_ptr.vmem [resolvable:$true] %s285
      %288 = dma.vmem_to_hbm [thread:$0]  %s286, 128, %s5, [#allocation4]
    $region33: #{_lambda_.1} parent=1 // pred_fallthru
      _
    // Predicated region
    $region34: #{_lambda_.1} parent=1 // pred_check
      _
    $region35: #{_lambda_.1} parent=1 // pred_check_branch
      %290 = sbr.rel (0) target = $region37
    $region36: #{_lambda_.1} parent=1 // pred_region
      %291 = dma.done [#allocation4], 128
    $region37: #{_lambda_.1} parent=1 // pred_fallthru
      _
    %292 = vsyncpa [#allocation3], 1
    %293 = vsyncpa [#allocation6], 1
    %294 = vsyncpa [#allocation4], 1

</llo_original>
